<compile_context>
chip_gen: v7x
topology: tpu7x:2x2x1
jax: 0.10.0
libtpu: 0.0.40
codegen_flags: <defaults>
</compile_context>

<pallas_src>
import jax
import jax.numpy as jnp
from jax import lax
from jax.experimental import pallas as pl
from jax.experimental.pallas import tpu as pltpu


_LANE = 128
_SUBLANE = 8
_FIXED_VMEM = 2 << 20  # Mosaic internal scratch / relayout temporaries


def _round_up(x, m):
    return ((x + m - 1) // m) * m


def _round_down(x, m):
    return (x // m) * m


def _vmem_capacity_bytes():
    """Physical VMEM of the local TPU (128 MiB on v5e/v6e, 64 MiB/core on v7x)."""
    try:
        return int(pltpu.get_tpu_info().vmem_capacity_bytes)
    except Exception:  # interpret mode / missing attribute: assume big parts
        return 128 << 20


def _padded_row_bytes(R, D):
    """f32 VMEM bytes per batch row, including (8,128) tile padding."""
    rd_lanes = _round_up(R * D, _LANE)   # ctx block: minor dim padded to lanes
    d_lanes = _round_up(D, _LANE)        # q block
    r_sub = _round_up(R, _SUBLANE)       # transposed (R, bb) slabs
    d_sub = _round_up(D, _SUBLANE)
    # Double-buffered pipeline blocks: q (bb,D), ctx (bb,R*D) in; w (R,bb) out.
    io = 2 * 4 * (d_lanes + rd_lanes + r_sub)
    # Single-buffered kernel transients (batch on lanes, so per-row = per-lane).
    scratch = 4 * (_round_up(R * D, _SUBLANE)   # ctx^T        (R*D, bb)
                   + R * d_sub                  # ctx^T * q^T  (R, D, bb)
                   + d_sub                      # q^T          (D, bb)
                   + 2 * R * r_sub              # cmp + masked cmp (R, R, bb)
                   + 8 * r_sub)                 # s, k, S, supp, tau, w, ...
    return io + scratch


def _choose_block_b(B, R, D, max_bb=2048):
    """Pick a lane-dense batch-slab size (multiple of 128)."""
    vmem = _vmem_capacity_bytes()
    # Keep the *padded* working set well inside every generation's scoped-VMEM
    # default even before we raise the limit explicitly (v5e default: 16 MiB).
    budget = min(12 << 20, vmem // 8)
    bb = (budget - _FIXED_VMEM) // _padded_row_bytes(R, D)
    bb = max(_LANE, min(max_bb, _round_down(bb, _LANE)))
    # Small-per-core-VMEM parts (v7x: 64 MiB, 2 TensorCores): keep >=4 grid
    # steps when the batch permits so each core overlaps >=2 context DMAs with
    # compute.  Single-TC 128 MiB parts get one big slab (no forced split).
    if vmem < (100 << 20) and B >= 4 * _LANE:
        bb = min(bb, max(_LANE, _round_down(B // 4, _LANE)))
    return bb


def _vmem_limit_bytes(bb, R, D):
    """Explicit scoped-VMEM limit: padded working set + ~25% headroom."""
    est = bb * _padded_row_bytes(R, D) + _FIXED_VMEM
    cap = _vmem_capacity_bytes()
    return int(max(16 << 20, min(est * 5 // 4, 3 * cap // 4)))


def _rule_attention_kernel(q_ref, ctx_ref, w_ref):
    """One batch slab.

    q_ref:   (bb, D)      query rows
    ctx_ref: (bb, R*D)    context rows, row-major [rule, dim] on lanes
    w_ref:   (R, bb)      sparsemax weights, transposed (batch on lanes)
    """
    R = w_ref.shape[0]
    bb = q_ref.shape[0]
    D = q_ref.shape[1]

    # --- scores, batch-on-lanes -------------------------------------------
    # Transpose the slab once (XLU) so D sits on sublanes and the batch on
    # lanes; the multiply and the D-reduction then run on fully dense 128-lane
    # vregs, and the result lands directly in the (R, bb) layout the sparsemax
    # stage and the output store want.  Exact f32 (no MXU precision games).
    ctx_t = ctx_ref[...].T.reshape(R, D, bb)          # (R, D, bb)
    q_t = q_ref[...].T                                # (D, bb)
    s_t = jnp.sum(ctx_t * q_t[None, :, :], axis=1)    # (R, bb) f32

    # --- sparsemax over the rule axis (Martins & Astudillo, sort-free) -----
    #   cmp[i,j,b] = 1{ s[j,b] >= s[i,b] }   (single tensor -> diagonal exact)
    #   k_i = #{ j : s_j >= s_i },  S_i = sum_{j : s_j >= s_i} s_j
    #   i in support  <=>  1 + k_i * s_i > S_i
    #   tau = (sum_{support} s - 1) / |support| ;  p_i = max(s_i - tau, 0)
    cmp = s_t[None, :, :] >= s_t[:, None, :]                          # (R,R,bb) bool
    k_i = jnp.sum(cmp.astype(jnp.float32), axis=1)                    # (R, bb)
    S_i = jnp.sum(jnp.where(cmp, s_t[None, :, :], 0.0), axis=1)       # (R, bb)
    in_supp = (1.0 + k_i * s_t) > S_i                                 # (R, bb) bool
    supp_sz = jnp.sum(in_supp.astype(jnp.float32), axis=0, keepdims=True)    # (1,bb)
    supp_sum = jnp.sum(jnp.where(in_supp, s_t, 0.0), axis=0, keepdims=True)  # (1,bb)
    tau = (supp_sum - 1.0) / supp_sz                                  # (1, bb)
    w_ref[...] = jnp.maximum(s_t - tau, 0.0).astype(w_ref.dtype)      # (R, bb)


def _sparse_attention_call(q2, ctx_flat, *, R, D, bb, n_rows):
    """Run the kernel over rows [0, n_rows) of q2/ctx_flat; bb divides n_rows."""
    n_blocks = n_rows // bb
    assert n_blocks * bb == n_rows
    return pl.pallas_call(
        _rule_attention_kernel,
        out_shape=jax.ShapeDtypeStruct((R, n_rows), jnp.float32),
        grid_spec=pltpu.PrefetchScalarGridSpec(
            num_scalar_prefetch=0,
            grid=(n_blocks,),
            in_specs=[
                pl.BlockSpec((bb, D), lambda b: (b, 0)),       # query rows
                pl.BlockSpec((bb, R * D), lambda b: (b, 0)),   # context rows (lane-dense)
            ],
            out_specs=pl.BlockSpec((R, bb), lambda b: (0, b)),  # transposed, lane-dense
        ),
        compiler_params=pltpu.CompilerParams(
            dimension_semantics=("parallel",),
            vmem_limit_bytes=_vmem_limit_bytes(bb, R, D),
        ),
    )(q2, ctx_flat)


def rule_attention(query, context, *, block_b=None):
    """query: [B, 1, D] f32, context: [B, R, D] f32 -> sparsemax weights [B, R]."""
    B, O, D = query.shape
    Bc, R, Dc = context.shape
    assert O == 1, "reference module uses output_len == 1"
    assert Bc == B and Dc == D

    q2 = query.reshape(B, D).astype(jnp.float32)
    ctx_flat = context.reshape(B, R * D).astype(jnp.float32)  # free row-major view
    # TODO(synk): optional bf16 cast of query/context here would halve the HBM
    # read once DMA-bound, at the cost of the tight f32 tolerances below.

    if block_b is None:
        bb = _choose_block_b(B, R, D)
    else:
        bb = max(_LANE, _round_down(int(block_b), _LANE))  # keep output lane-dense

    n_full = (B // bb) * bb
    rem = B - n_full

    parts = []
    if n_full:
        # Whole blocks are read straight out of the unpadded inputs; the grid
        # covers only the full blocks, so no copy of the big context is made.
        parts.append(
            _sparse_attention_call(q2, ctx_flat, R=R, D=D, bb=bb, n_rows=n_full))
    if rem:
        # Ragged tail: pad ONLY the small leftover slice (never the full
        # context) up to a sublane multiple and run one full-array block.
        rem8 = _round_up(rem, _SUBLANE)
        q_t = q2[n_full:]
        c_t = ctx_flat[n_full:]
        if rem8 != rem:
            q_t = jnp.pad(q_t, ((0, rem8 - rem), (0, 0)))
            c_t = jnp.pad(c_t, ((0, rem8 - rem), (0, 0)))
        tail = _sparse_attention_call(q_t, c_t, R=R, D=D, bb=rem8, n_rows=rem8)
        parts.append(tail[:, :rem])

    w_t = parts[0] if len(parts) == 1 else jnp.concatenate(parts, axis=1)  # (R, B)
    return jnp.transpose(w_t)  # (B*1, R); tiny array, cheap un-transpose


# ----------------------------- pure-JAX reference -----------------------------

def _sparsemax_ref(z):
    """Sort-based sparsemax reference, z: [N, K]."""
    K = z.shape[-1]
    z_sorted = -jnp.sort(-z, axis=-1)
    ks = jnp.arange(1, K + 1, dtype=z.dtype)
    cssv = jnp.cumsum(z_sorted, axis=-1)
    cond = 1.0 + ks * z_sorted > cssv
    rho = jnp.sum(cond, axis=-1).astype(jnp.int32)
    cssv_rho = jnp.take_along_axis(cssv, rho[:, None] - 1, axis=-1)
    tau = (cssv_rho - 1.0) / rho[:, None].astype(z.dtype)
    return jnp.maximum(z - tau, 0.0)


def _rule_attention_ref(query, context):
    B, O, D = query.shape
    R = context.shape[1]
    scores = jnp.einsum("bod,brd->bor", query, context,
                        precision=lax.Precision.HIGHEST).reshape(B * O, R)
    return _sparsemax_ref(scores)


if __name__ == "__main__":
    key = jax.random.PRNGKey(0)

    cases = [
        (2, 8, 32, None),    # tiny batch -> single padded full-array tail call
        (37, 8, 32, None),   # batch not a multiple of 8 -> odd-row tail call
        (256, 8, 32, 128),   # main path only: two lane-dense 128-row blocks
        (300, 8, 32, 128),   # main path (2 blocks) + 44-row tail, output concat
    ]
    for (B, R, D, bb) in cases:
        kq, kc, key = jax.random.split(key, 3)
        query = jax.random.normal(kq, (B, 1, D), dtype=jnp.float32)
        context = jax.random.normal(kc, (B, R, D), dtype=jnp.float32)

        weights = rule_attention(query, context, block_b=bb)
        jax.block_until_ready(weights)

        ref = _rule_attention_ref(query, context)
        assert weights.shape == (B * 1, R)
        assert bool(jnp.all(weights >= 0.0))
        # sparsemax rows sum to 1
        assert jnp.allclose(jnp.sum(weights, axis=-1), 1.0, atol=1e-4)
        assert jnp.allclose(weights, ref, atol=1e-4, rtol=1e-4)

    print("KERNEL_OK")
</pallas_src>

<mosaic_0001>
module attributes {stable_mosaic.version = 11 : i64} {
  func.func @_rule_attention_kernel(%arg0: i32, %arg1: memref<8x32xf32, #tpu.memory_space<vmem>>, %arg2: memref<8x256xf32, #tpu.memory_space<vmem>>, %arg3: memref<8x8xf32, #tpu.memory_space<vmem>>) attributes {dimension_semantics = [#tpu.dimension_semantics<parallel>], iteration_bounds = array<i64: 1>, scalar_prefetch = 0 : i64, scratch_operands = 0 : i64, tpu.core_type = #tpu.core_type<tc>, window_params = [{transform_indices = @transform_0, window_bounds = array<i64: 8, 32>}, {transform_indices = @transform_1, window_bounds = array<i64: 8, 256>}, {transform_indices = @transform_2, window_bounds = array<i64: 8, 8>}]} {
    %c0 = arith.constant 0 : index
    %c0_0 = arith.constant 0 : index
    %0 = vector.load %arg2[%c0, %c0_0] : memref<8x256xf32, #tpu.memory_space<vmem>>, vector<8x256xf32>
    %1 = tpu.transpose %0, [1, 0] : vector<8x256xf32> -> vector<256x8xf32>
    %2 = vector.shape_cast %1 : vector<256x8xf32> to vector<8x32x8xf32>
    %c0_1 = arith.constant 0 : index
    %c0_2 = arith.constant 0 : index
    %3 = vector.load %arg1[%c0_1, %c0_2] : memref<8x32xf32, #tpu.memory_space<vmem>>, vector<8x32xf32>
    %4 = tpu.transpose %3, [1, 0] : vector<8x32xf32> -> vector<32x8xf32>
    %5 = vector.shape_cast %4 : vector<32x8xf32> to vector<1x32x8xf32>
    %6 = vector.broadcast %5 : vector<1x32x8xf32> to vector<8x32x8xf32>
    %7 = arith.mulf %2, %6 : vector<8x32x8xf32>
    %cst = arith.constant dense<0.000000e+00> : vector<8x8xf32>
    %8 = vector.multi_reduction <add>, %7, %cst [1] : vector<8x32x8xf32> to vector<8x8xf32>
    %9 = vector.shape_cast %8 : vector<8x8xf32> to vector<1x8x8xf32>
    %10 = vector.shape_cast %8 : vector<8x8xf32> to vector<8x1x8xf32>
    %11 = vector.broadcast %9 : vector<1x8x8xf32> to vector<8x8x8xf32>
    %12 = vector.broadcast %10 : vector<8x1x8xf32> to vector<8x8x8xf32>
    %13 = arith.cmpf oge, %11, %12 : vector<8x8x8xf32>
    %14 = arith.extui %13 : vector<8x8x8xi1> to vector<8x8x8xi32>
    %15 = arith.sitofp %14 : vector<8x8x8xi32> to vector<8x8x8xf32>
    %cst_3 = arith.constant dense<0.000000e+00> : vector<8x8xf32>
    %16 = vector.multi_reduction <add>, %15, %cst_3 [1] : vector<8x8x8xf32> to vector<8x8xf32>
    %17 = vector.shape_cast %8 : vector<8x8xf32> to vector<1x8x8xf32>
    %cst_4 = arith.constant 0.000000e+00 : f32
    %18 = vector.shape_cast %17 : vector<1x8x8xf32> to vector<1x8x8xf32>
    %19 = vector.broadcast %18 : vector<1x8x8xf32> to vector<8x8x8xf32>
    %20 = vector.broadcast %cst_4 : f32 to vector<8x8x8xf32>
    %21 = arith.select %13, %19, %20 : vector<8x8x8xi1>, vector<8x8x8xf32>
    %cst_5 = arith.constant dense<0.000000e+00> : vector<8x8xf32>
    %22 = vector.multi_reduction <add>, %21, %cst_5 [1] : vector<8x8x8xf32> to vector<8x8xf32>
    %23 = arith.mulf %16, %8 : vector<8x8xf32>
    %cst_6 = arith.constant 1.000000e+00 : f32
    %24 = vector.broadcast %cst_6 : f32 to vector<8x8xf32>
    %25 = arith.addf %24, %23 : vector<8x8xf32>
    %26 = arith.cmpf ogt, %25, %22 : vector<8x8xf32>
    %27 = arith.extui %26 : vector<8x8xi1> to vector<8x8xi32>
    %28 = arith.sitofp %27 : vector<8x8xi32> to vector<8x8xf32>
    %cst_7 = arith.constant dense<0.000000e+00> : vector<8xf32>
    %29 = vector.multi_reduction <add>, %28, %cst_7 [0] : vector<8x8xf32> to vector<8xf32>
    %30 = vector.shape_cast %29 : vector<8xf32> to vector<1x8xf32>
    %cst_8 = arith.constant 0.000000e+00 : f32
    %31 = vector.broadcast %cst_8 : f32 to vector<8x8xf32>
    %32 = arith.select %26, %8, %31 : vector<8x8xi1>, vector<8x8xf32>
    %cst_9 = arith.constant dense<0.000000e+00> : vector<8xf32>
    %33 = vector.multi_reduction <add>, %32, %cst_9 [0] : vector<8x8xf32> to vector<8xf32>
    %34 = vector.shape_cast %33 : vector<8xf32> to vector<1x8xf32>
    %cst_10 = arith.constant 1.000000e+00 : f32
    %35 = vector.broadcast %cst_10 : f32 to vector<1x8xf32>
    %36 = arith.subf %34, %35 : vector<1x8xf32>
    %37 = arith.divf %36, %30 : vector<1x8xf32>
    %38 = vector.broadcast %37 : vector<1x8xf32> to vector<8x8xf32>
    %39 = arith.subf %8, %38 : vector<8x8xf32>
    %cst_11 = arith.constant 0.000000e+00 : f32
    %40 = vector.broadcast %cst_11 : f32 to vector<8x8xf32>
    %41 = arith.maximumf %39, %40 : vector<8x8xf32>
    %c0_12 = arith.constant 0 : index
    %c0_13 = arith.constant 0 : index
    %42 = vector.load %arg3[%c0_12, %c0_13] : memref<8x8xf32, #tpu.memory_space<vmem>>, vector<8x8xf32>
    tpu.vector_store %arg3[%c0_12, %c0_13], %41 {strides = array<i32>} : memref<8x8xf32, #tpu.memory_space<vmem>>, vector<8x8xf32>,
    return
  }
  func.func @transform_0(%arg0: i32) -> (i32, i32) {
    %c0_i32 = arith.constant 0 : i32
    %c0_i32_0 = arith.constant 0 : i32
    return %arg0, %c0_i32 : i32, i32
  }
  func.func @transform_1(%arg0: i32) -> (i32, i32) {
    %c0_i32 = arith.constant 0 : i32
    %c0_i32_0 = arith.constant 0 : i32
    return %arg0, %c0_i32 : i32, i32
  }
  func.func @transform_2(%arg0: i32) -> (i32, i32) {
    %c0_i32 = arith.constant 0 : i32
    %c0_i32_0 = arith.constant 0 : i32
    return %c0_i32, %arg0 : i32, i32
  }
}

</mosaic_0001>

<llo_original>
// kernel: tpu_custom_call.1
$region0: #{tpu_custom_call.1}
  #allocation0 [shape = 'u32[]', space=smem, size = 0x4, offset = 0x4, fixed_abs, tag = 'smem constant byte address 0x4 - core index']
  #allocation1 [shape = 'u32[144,128]{1,0:T(1,128)}', space=vmem, size = 0x12000, scoped, tag = 'internal scratch']
  %s0 = inlined_call_operand.hbm [shape: f32[8,32], index: 0, kind: input, shape index: {}]
  %s1 = inlined_call_operand.hbm [shape: f32[8,256], index: 1, kind: input, shape index: {}]
  %s2 = inlined_call_operand.hbm [shape: f32[8,8], index: 2, kind: output, shape index: {}]
  %s3 = sld [smem:[#allocation0]]
  $region26: #{tpu_custom_call.1} parent=0
    _
  %s5 = ssub.s32 1, %s3
  %s6 = scalar_select 0, %s5, %s3
  $region1: #{tpu_custom_call.1} parent=0
    #allocation2 [shape = 'u8[4096]{0}', space=vmem, size = 0x1000, scoped, tag = 'input window, operand 0, single buffered']
    #allocation3 [shape = 's32[1]{0}', space=sflag, size = 0x4, scoped, tag = 'scoped memory for tpu_custom_call.1']
    #allocation4 [shape = 's32[1]{0}', space=sflag, size = 0x4, scoped, tag = 'scoped memory for tpu_custom_call.1']
    #allocation5 [shape = 'u8[8192]{0}', space=vmem, size = 0x2000, scoped, tag = 'input window, operand 1, single buffered']
    #allocation6 [shape = 's32[1]{0}', space=sflag, size = 0x4, scoped, tag = 'scoped memory for tpu_custom_call.1']
    #allocation7 [shape = 'u8[4096]{0}', space=vmem, size = 0x1000, scoped, tag = 'output window, operand 0, single buffered']
    %7 = vsyncpa [#allocation3], 0
    %8 = vsyncpa [#allocation6], 0
    %9 = vsyncpa [#allocation4], 0
    // Predicated region
    $region2: #{tpu_custom_call.1} parent=1 // pred_check
      _
    $region3: #{tpu_custom_call.1} parent=1 // pred_check_branch
      %11 = sbr.rel (0) target = $region5
    $region4: #{tpu_custom_call.1} parent=1 // pred_region
      %s13 = ssub.s32 128, 128
      %14 = vsyncadd [#allocation3], %s13
      %s16 = sshll.u32 [#allocation2], 4
      %s17 = int_to_ptr.vmem [resolvable:$true] %s16
      %19 = dma.hbm_to_vmem [thread:$0]  %s0, 128, %s17, [#allocation3]
    $region5: #{tpu_custom_call.1} parent=1 // pred_fallthru
      _
    // Predicated region
    $region6: #{tpu_custom_call.1} parent=1 // pred_check
      _
    $region7: #{tpu_custom_call.1} parent=1 // pred_check_branch
      %21 = sbr.rel (0) target = $region9
    $region8: #{tpu_custom_call.1} parent=1 // pred_region
      %s23 = ssub.s32 256, 256
      %24 = vsyncadd [#allocation6], %s23
      %s26 = sshll.u32 [#allocation5], 4
      %s27 = int_to_ptr.vmem [resolvable:$true] %s26
      %29 = dma.hbm_to_vmem [thread:$0]  %s1, 256, %s27, [#allocation6]
    $region9: #{tpu_custom_call.1} parent=1 // pred_fallthru
      _
    // Predicated region
    $region10: #{tpu_custom_call.1} parent=1 // pred_check
      _
    $region11: #{tpu_custom_call.1} parent=1 // pred_check_branch
      %31 = sbr.rel (0) target = $region13
    $region12: #{tpu_custom_call.1} parent=1 // pred_region
      %32 = dma.done [#allocation3], 128
    $region13: #{tpu_custom_call.1} parent=1 // pred_fallthru
      _
    // Predicated region
    $region14: #{tpu_custom_call.1} parent=1 // pred_check
      _
    $region15: #{tpu_custom_call.1} parent=1 // pred_check_branch
      %34 = sbr.rel (0) target = $region17
    $region16: #{tpu_custom_call.1} parent=1 // pred_region
      %35 = dma.done [#allocation6], 256
    $region17: #{tpu_custom_call.1} parent=1 // pred_fallthru
      _
    %v36 = vld [vmem:[#allocation5] sm:$0xff]
    %v37 = vld [vmem:[#allocation5 + $0x8] sm:$0xff]
    %38 = vxpose.xlu0.b32.start [1/16] %v36, 128
    %39 = vxpose.xlu0.b32.cont [2/16] 0.0, 128
    %40 = vxpose.xlu0.b32.cont [3/16] 0.0, 128
    %41 = vxpose.xlu0.b32.cont [4/16] 0.0, 128
    %42 = vxpose.xlu0.b32.cont [5/16] 0.0, 128
    %43 = vxpose.xlu0.b32.cont [6/16] 0.0, 128
    %44 = vxpose.xlu0.b32.cont [7/16] 0.0, 128
    %45 = vxpose.xlu0.b32.cont [8/16] 0.0, 128
    %46 = vxpose.xlu0.b32.cont [9/16] 0.0, 128
    %47 = vxpose.xlu0.b32.cont [10/16] 0.0, 128
    %48 = vxpose.xlu0.b32.cont [11/16] 0.0, 128
    %49 = vxpose.xlu0.b32.cont [12/16] 0.0, 128
    %50 = vxpose.xlu0.b32.cont [13/16] 0.0, 128
    %51 = vxpose.xlu0.b32.cont [14/16] 0.0, 128
    %52 = vxpose.xlu0.b32.cont [15/16] 0.0, 128
    %53 = vxpose.xlu0.b32.end [16/16] 0.0, 128
    %v54 = vpop.trf.xlu0
    %v55 = vpop.trf.xlu0
    %v56 = vpop.trf.xlu0
    %v57 = vpop.trf.xlu0
    %v58 = vpop.trf.xlu0
    %v59 = vpop.trf.xlu0
    %v60 = vpop.trf.xlu0
    %v61 = vpop.trf.xlu0
    %v62 = vpop.trf.xlu0
    %v63 = vpop.trf.xlu0
    %v64 = vpop.trf.xlu0
    %v65 = vpop.trf.xlu0
    %v66 = vpop.trf.xlu0
    %v67 = vpop.trf.xlu0
    %v68 = vpop.trf.xlu0
    %v69 = vpop.trf.xlu0
    %70 = vxpose.xlu0.b32.start [1/16] %v37, 128
    %71 = vxpose.xlu0.b32.cont [2/16] 0.0, 128
    %72 = vxpose.xlu0.b32.cont [3/16] 0.0, 128
    %73 = vxpose.xlu0.b32.cont [4/16] 0.0, 128
    %74 = vxpose.xlu0.b32.cont [5/16] 0.0, 128
    %75 = vxpose.xlu0.b32.cont [6/16] 0.0, 128
    %76 = vxpose.xlu0.b32.cont [7/16] 0.0, 128
    %77 = vxpose.xlu0.b32.cont [8/16] 0.0, 128
    %78 = vxpose.xlu0.b32.cont [9/16] 0.0, 128
    %79 = vxpose.xlu0.b32.cont [10/16] 0.0, 128
    %80 = vxpose.xlu0.b32.cont [11/16] 0.0, 128
    %81 = vxpose.xlu0.b32.cont [12/16] 0.0, 128
    %82 = vxpose.xlu0.b32.cont [13/16] 0.0, 128
    %83 = vxpose.xlu0.b32.cont [14/16] 0.0, 128
    %84 = vxpose.xlu0.b32.cont [15/16] 0.0, 128
    %85 = vxpose.xlu0.b32.end [16/16] 0.0, 128
    %v86 = vpop.trf.xlu0
    %v87 = vpop.trf.xlu0
    %v88 = vpop.trf.xlu0
    %v89 = vpop.trf.xlu0
    %v90 = vpop.trf.xlu0
    %v91 = vpop.trf.xlu0
    %v92 = vpop.trf.xlu0
    %v93 = vpop.trf.xlu0
    %v94 = vpop.trf.xlu0
    %v95 = vpop.trf.xlu0
    %v96 = vpop.trf.xlu0
    %v97 = vpop.trf.xlu0
    %v98 = vpop.trf.xlu0
    %v99 = vpop.trf.xlu0
    %v100 = vpop.trf.xlu0
    %v101 = vpop.trf.xlu0
    %v102 = vld [vmem:[#allocation2] sm:$0xff]
    %103 = vxpose.xlu0.b32.start [1/16] %v102, 128
    %104 = vxpose.xlu0.b32.cont [2/16] 0.0, 128
    %105 = vxpose.xlu0.b32.cont [3/16] 0.0, 128
    %106 = vxpose.xlu0.b32.cont [4/16] 0.0, 128
    %107 = vxpose.xlu0.b32.cont [5/16] 0.0, 128
    %108 = vxpose.xlu0.b32.cont [6/16] 0.0, 128
    %109 = vxpose.xlu0.b32.cont [7/16] 0.0, 128
    %110 = vxpose.xlu0.b32.cont [8/16] 0.0, 128
    %111 = vxpose.xlu0.b32.cont [9/16] 0.0, 128
    %112 = vxpose.xlu0.b32.cont [10/16] 0.0, 128
    %113 = vxpose.xlu0.b32.cont [11/16] 0.0, 128
    %114 = vxpose.xlu0.b32.cont [12/16] 0.0, 128
    %115 = vxpose.xlu0.b32.cont [13/16] 0.0, 128
    %116 = vxpose.xlu0.b32.cont [14/16] 0.0, 128
    %117 = vxpose.xlu0.b32.cont [15/16] 0.0, 128
    %118 = vxpose.xlu0.b32.end [16/16] 0.0, 128
    %v119 = vpop.trf.xlu0
    %v120 = vpop.trf.xlu0
    %v121 = vpop.trf.xlu0
    %v122 = vpop.trf.xlu0
    %v123 = vpop.trf.xlu0
    %v124 = vpop.trf.xlu0
    %v125 = vpop.trf.xlu0
    %v126 = vpop.trf.xlu0
    %v127 = vpop.trf.xlu0
    %v128 = vpop.trf.xlu0
    %v129 = vpop.trf.xlu0
    %v130 = vpop.trf.xlu0
    %v131 = vpop.trf.xlu0
    %v132 = vpop.trf.xlu0
    %v133 = vpop.trf.xlu0
    %v134 = vpop.trf.xlu0
    %v135 = vmul.f32 %v54, %v119
    %v136 = vmul.f32 %v55, %v120
    %v137 = vmul.f32 %v56, %v121
    %v138 = vmul.f32 %v57, %v122
    %v139 = vmul.f32 %v58, %v119
    %v140 = vmul.f32 %v59, %v120
    %v141 = vmul.f32 %v60, %v121
    %v142 = vmul.f32 %v61, %v122
    %v143 = vmul.f32 %v62, %v119
    %v144 = vmul.f32 %v63, %v120
    %v145 = vmul.f32 %v64, %v121
    %v146 = vmul.f32 %v65, %v122
    %v147 = vmul.f32 %v66, %v119
    %v148 = vmul.f32 %v67, %v120
    %v149 = vmul.f32 %v68, %v121
    %v150 = vmul.f32 %v69, %v122
    %v151 = vmul.f32 %v86, %v119
    %v152 = vmul.f32 %v87, %v120
    %v153 = vmul.f32 %v88, %v121
    %v154 = vmul.f32 %v89, %v122
    %v155 = vmul.f32 %v90, %v119
    %v156 = vmul.f32 %v91, %v120
    %v157 = vmul.f32 %v92, %v121
    %v158 = vmul.f32 %v93, %v122
    %v159 = vmul.f32 %v94, %v119
    %v160 = vmul.f32 %v95, %v120
    %v161 = vmul.f32 %v96, %v121
    %v162 = vmul.f32 %v97, %v122
    %v163 = vmul.f32 %v98, %v119
    %v164 = vmul.f32 %v99, %v120
    %v165 = vmul.f32 %v100, %v121
    %v166 = vmul.f32 %v101, %v122
    %vm167 = vcmask 64512
    %v168 = vsel %vm167, %v135, 0.0
    %v169 = vsel %vm167, %v136, 0.0
    %v170 = vadd.f32 %v168, %v169
    %v171 = vsel %vm167, %v137, 0.0
    %v172 = vadd.f32 %v170, %v171
    %v173 = vsel %vm167, %v138, 0.0
    %v174 = vadd.f32 %v172, %v173
    %v175 = vrot.slane %v174, 4
    %v176 = vadd.f32 %v174, %v175
    %v177 = vrot.slane %v176, 2
    %v178 = vadd.f32 %v176, %v177
    %v179 = vrot.slane %v178, 1
    %v180 = vadd.f32 %v178, %v179
    %v181 = vsel %vm167, %v139, 0.0
    %v182 = vsel %vm167, %v140, 0.0
    %v183 = vadd.f32 %v181, %v182
    %v184 = vsel %vm167, %v141, 0.0
    %v185 = vadd.f32 %v183, %v184
    %v186 = vsel %vm167, %v142, 0.0
    %v187 = vadd.f32 %v185, %v186
    %v188 = vrot.slane %v187, 4
    %v189 = vadd.f32 %v187, %v188
    %v190 = vrot.slane %v189, 2
    %v191 = vadd.f32 %v189, %v190
    %v192 = vrot.slane %v191, 1
    %v193 = vadd.f32 %v191, %v192
    %v194 = vsel %vm167, %v143, 0.0
    %v195 = vsel %vm167, %v144, 0.0
    %v196 = vadd.f32 %v194, %v195
    %v197 = vsel %vm167, %v145, 0.0
    %v198 = vadd.f32 %v196, %v197
    %v199 = vsel %vm167, %v146, 0.0
    %v200 = vadd.f32 %v198, %v199
    %v201 = vrot.slane %v200, 4
    %v202 = vadd.f32 %v200, %v201
    %v203 = vrot.slane %v202, 2
    %v204 = vadd.f32 %v202, %v203
    %v205 = vrot.slane %v204, 1
    %v206 = vadd.f32 %v204, %v205
    %v207 = vsel %vm167, %v147, 0.0
    %v208 = vsel %vm167, %v148, 0.0
    %v209 = vadd.f32 %v207, %v208
    %v210 = vsel %vm167, %v149, 0.0
    %v211 = vadd.f32 %v209, %v210
    %v212 = vsel %vm167, %v150, 0.0
    %v213 = vadd.f32 %v211, %v212
    %v214 = vrot.slane %v213, 4
    %v215 = vadd.f32 %v213, %v214
    %v216 = vrot.slane %v215, 2
    %v217 = vadd.f32 %v215, %v216
    %v218 = vrot.slane %v217, 1
    %v219 = vadd.f32 %v217, %v218
    %v220 = vsel %vm167, %v151, 0.0
    %v221 = vsel %vm167, %v152, 0.0
    %v222 = vadd.f32 %v220, %v221
    %v223 = vsel %vm167, %v153, 0.0
    %v224 = vadd.f32 %v222, %v223
    %v225 = vsel %vm167, %v154, 0.0
    %v226 = vadd.f32 %v224, %v225
    %v227 = vrot.slane %v226, 4
    %v228 = vadd.f32 %v226, %v227
    %v229 = vrot.slane %v228, 2
    %v230 = vadd.f32 %v228, %v229
    %v231 = vrot.slane %v230, 1
    %v232 = vadd.f32 %v230, %v231
    %v233 = vsel %vm167, %v155, 0.0
    %v234 = vsel %vm167, %v156, 0.0
    %v235 = vadd.f32 %v233, %v234
    %v236 = vsel %vm167, %v157, 0.0
    %v237 = vadd.f32 %v235, %v236
    %v238 = vsel %vm167, %v158, 0.0
    %v239 = vadd.f32 %v237, %v238
    %v240 = vrot.slane %v239, 4
    %v241 = vadd.f32 %v239, %v240
    %v242 = vrot.slane %v241, 2
    %v243 = vadd.f32 %v241, %v242
    %v244 = vrot.slane %v243, 1
    %v245 = vadd.f32 %v243, %v244
    %v246 = vsel %vm167, %v159, 0.0
    %v247 = vsel %vm167, %v160, 0.0
    %v248 = vadd.f32 %v246, %v247
    %v249 = vsel %vm167, %v161, 0.0
    %v250 = vadd.f32 %v248, %v249
    %v251 = vsel %vm167, %v162, 0.0
    %v252 = vadd.f32 %v250, %v251
    %v253 = vrot.slane %v252, 4
    %v254 = vadd.f32 %v252, %v253
    %v255 = vrot.slane %v254, 2
    %v256 = vadd.f32 %v254, %v255
    %v257 = vrot.slane %v256, 1
    %v258 = vadd.f32 %v256, %v257
    %v259 = vsel %vm167, %v163, 0.0
    %v260 = vsel %vm167, %v164, 0.0
    %v261 = vadd.f32 %v259, %v260
    %v262 = vsel %vm167, %v165, 0.0
    %v263 = vadd.f32 %v261, %v262
    %v264 = vsel %vm167, %v166, 0.0
    %v265 = vadd.f32 %v263, %v264
    %v266 = vrot.slane %v265, 4
    %v267 = vadd.f32 %v265, %v266
    %v268 = vrot.slane %v267, 2
    %v269 = vadd.f32 %v267, %v268
    %v270 = vrot.slane %v269, 1
    %v271 = vadd.f32 %v269, %v270
    %vm272 = vcmp.ge.f32.partialorder %v180, %v180
    %vm273 = vcmp.ge.f32.partialorder %v193, %v180
    %vm274 = vcmp.ge.f32.partialorder %v206, %v180
    %vm275 = vcmp.ge.f32.partialorder %v219, %v180
    %vm276 = vcmp.ge.f32.partialorder %v232, %v180
    %vm277 = vcmp.ge.f32.partialorder %v245, %v180
    %vm278 = vcmp.ge.f32.partialorder %v258, %v180
    %vm279 = vcmp.ge.f32.partialorder %v271, %v180
    %vm280 = vcmp.ge.f32.partialorder %v180, %v193
    %vm281 = vcmp.ge.f32.partialorder %v193, %v193
    %vm282 = vcmp.ge.f32.partialorder %v206, %v193
    %vm283 = vcmp.ge.f32.partialorder %v219, %v193
    %vm284 = vcmp.ge.f32.partialorder %v232, %v193
    %vm285 = vcmp.ge.f32.partialorder %v245, %v193
    %vm286 = vcmp.ge.f32.partialorder %v258, %v193
    %vm287 = vcmp.ge.f32.partialorder %v271, %v193
    %vm288 = vcmp.ge.f32.partialorder %v180, %v206
    %vm289 = vcmp.ge.f32.partialorder %v193, %v206
    %vm290 = vcmp.ge.f32.partialorder %v206, %v206
    %vm291 = vcmp.ge.f32.partialorder %v219, %v206
    %vm292 = vcmp.ge.f32.partialorder %v232, %v206
    %vm293 = vcmp.ge.f32.partialorder %v245, %v206
    %vm294 = vcmp.ge.f32.partialorder %v258, %v206
    %vm295 = vcmp.ge.f32.partialorder %v271, %v206
    %vm296 = vcmp.ge.f32.partialorder %v180, %v219
    %vm297 = vcmp.ge.f32.partialorder %v193, %v219
    %vm298 = vcmp.ge.f32.partialorder %v206, %v219
    %vm299 = vcmp.ge.f32.partialorder %v219, %v219
    %vm300 = vcmp.ge.f32.partialorder %v232, %v219
    %vm301 = vcmp.ge.f32.partialorder %v245, %v219
    %vm302 = vcmp.ge.f32.partialorder %v258, %v219
    %vm303 = vcmp.ge.f32.partialorder %v271, %v219
    %vm304 = vcmp.ge.f32.partialorder %v180, %v232
    %vm305 = vcmp.ge.f32.partialorder %v193, %v232
    %vm306 = vcmp.ge.f32.partialorder %v206, %v232
    %vm307 = vcmp.ge.f32.partialorder %v219, %v232
    %vm308 = vcmp.ge.f32.partialorder %v232, %v232
    %vm309 = vcmp.ge.f32.partialorder %v245, %v232
    %vm310 = vcmp.ge.f32.partialorder %v258, %v232
    %vm311 = vcmp.ge.f32.partialorder %v271, %v232
    %vm312 = vcmp.ge.f32.partialorder %v180, %v245
    %vm313 = vcmp.ge.f32.partialorder %v193, %v245
    %vm314 = vcmp.ge.f32.partialorder %v206, %v245
    %vm315 = vcmp.ge.f32.partialorder %v219, %v245
    %vm316 = vcmp.ge.f32.partialorder %v232, %v245
    %vm317 = vcmp.ge.f32.partialorder %v245, %v245
    %vm318 = vcmp.ge.f32.partialorder %v258, %v245
    %vm319 = vcmp.ge.f32.partialorder %v271, %v245
    %vm320 = vcmp.ge.f32.partialorder %v180, %v258
    %vm321 = vcmp.ge.f32.partialorder %v193, %v258
    %vm322 = vcmp.ge.f32.partialorder %v206, %v258
    %vm323 = vcmp.ge.f32.partialorder %v219, %v258
    %vm324 = vcmp.ge.f32.partialorder %v232, %v258
    %vm325 = vcmp.ge.f32.partialorder %v245, %v258
    %vm326 = vcmp.ge.f32.partialorder %v258, %v258
    %vm327 = vcmp.ge.f32.partialorder %v271, %v258
    %vm328 = vcmp.ge.f32.partialorder %v180, %v271
    %vm329 = vcmp.ge.f32.partialorder %v193, %v271
    %vm330 = vcmp.ge.f32.partialorder %v206, %v271
    %vm331 = vcmp.ge.f32.partialorder %v219, %v271
    %vm332 = vcmp.ge.f32.partialorder %v232, %v271
    %vm333 = vcmp.ge.f32.partialorder %v245, %v271
    %vm334 = vcmp.ge.f32.partialorder %v258, %v271
    %vm335 = vcmp.ge.f32.partialorder %v271, %v271
    %v336 = vsel %vm272, 1, 0
    %v337 = vsel %vm273, 1, 0
    %v338 = vsel %vm274, 1, 0
    %v339 = vsel %vm275, 1, 0
    %v340 = vsel %vm276, 1, 0
    %v341 = vsel %vm277, 1, 0
    %v342 = vsel %vm278, 1, 0
    %v343 = vsel %vm279, 1, 0
    %v344 = vsel %vm280, 1, 0
    %v345 = vsel %vm281, 1, 0
    %v346 = vsel %vm282, 1, 0
    %v347 = vsel %vm283, 1, 0
    %v348 = vsel %vm284, 1, 0
    %v349 = vsel %vm285, 1, 0
    %v350 = vsel %vm286, 1, 0
    %v351 = vsel %vm287, 1, 0
    %v352 = vsel %vm288, 1, 0
    %v353 = vsel %vm289, 1, 0
    %v354 = vsel %vm290, 1, 0
    %v355 = vsel %vm291, 1, 0
    %v356 = vsel %vm292, 1, 0
    %v357 = vsel %vm293, 1, 0
    %v358 = vsel %vm294, 1, 0
    %v359 = vsel %vm295, 1, 0
    %v360 = vsel %vm296, 1, 0
    %v361 = vsel %vm297, 1, 0
    %v362 = vsel %vm298, 1, 0
    %v363 = vsel %vm299, 1, 0
    %v364 = vsel %vm300, 1, 0
    %v365 = vsel %vm301, 1, 0
    %v366 = vsel %vm302, 1, 0
    %v367 = vsel %vm303, 1, 0
    %v368 = vsel %vm304, 1, 0
    %v369 = vsel %vm305, 1, 0
    %v370 = vsel %vm306, 1, 0
    %v371 = vsel %vm307, 1, 0
    %v372 = vsel %vm308, 1, 0
    %v373 = vsel %vm309, 1, 0
    %v374 = vsel %vm310, 1, 0
    %v375 = vsel %vm311, 1, 0
    %v376 = vsel %vm312, 1, 0
    %v377 = vsel %vm313, 1, 0
    %v378 = vsel %vm314, 1, 0
    %v379 = vsel %vm315, 1, 0
    %v380 = vsel %vm316, 1, 0
    %v381 = vsel %vm317, 1, 0
    %v382 = vsel %vm318, 1, 0
    %v383 = vsel %vm319, 1, 0
    %v384 = vsel %vm320, 1, 0
    %v385 = vsel %vm321, 1, 0
    %v386 = vsel %vm322, 1, 0
    %v387 = vsel %vm323, 1, 0
    %v388 = vsel %vm324, 1, 0
    %v389 = vsel %vm325, 1, 0
    %v390 = vsel %vm326, 1, 0
    %v391 = vsel %vm327, 1, 0
    %v392 = vsel %vm328, 1, 0
    %v393 = vsel %vm329, 1, 0
    %v394 = vsel %vm330, 1, 0
    %v395 = vsel %vm331, 1, 0
    %v396 = vsel %vm332, 1, 0
    %v397 = vsel %vm333, 1, 0
    %v398 = vsel %vm334, 1, 0
    %v399 = vsel %vm335, 1, 0
    %v400 = vcvt.s32.f32 %v336
    %v401 = vcvt.s32.f32 %v337
    %v402 = vcvt.s32.f32 %v338
    %v403 = vcvt.s32.f32 %v339
    %v404 = vcvt.s32.f32 %v340
    %v405 = vcvt.s32.f32 %v341
    %v406 = vcvt.s32.f32 %v342
    %v407 = vcvt.s32.f32 %v343
    %v408 = vcvt.s32.f32 %v344
    %v409 = vcvt.s32.f32 %v345
    %v410 = vcvt.s32.f32 %v346
    %v411 = vcvt.s32.f32 %v347
    %v412 = vcvt.s32.f32 %v348
    %v413 = vcvt.s32.f32 %v349
    %v414 = vcvt.s32.f32 %v350
    %v415 = vcvt.s32.f32 %v351
    %v416 = vcvt.s32.f32 %v352
    %v417 = vcvt.s32.f32 %v353
    %v418 = vcvt.s32.f32 %v354
    %v419 = vcvt.s32.f32 %v355
    %v420 = vcvt.s32.f32 %v356
    %v421 = vcvt.s32.f32 %v357
    %v422 = vcvt.s32.f32 %v358
    %v423 = vcvt.s32.f32 %v359
    %v424 = vcvt.s32.f32 %v360
    %v425 = vcvt.s32.f32 %v361
    %v426 = vcvt.s32.f32 %v362
    %v427 = vcvt.s32.f32 %v363
    %v428 = vcvt.s32.f32 %v364
    %v429 = vcvt.s32.f32 %v365
    %v430 = vcvt.s32.f32 %v366
    %v431 = vcvt.s32.f32 %v367
    %v432 = vcvt.s32.f32 %v368
    %v433 = vcvt.s32.f32 %v369
    %v434 = vcvt.s32.f32 %v370
    %v435 = vcvt.s32.f32 %v371
    %v436 = vcvt.s32.f32 %v372
    %v437 = vcvt.s32.f32 %v373
    %v438 = vcvt.s32.f32 %v374
    %v439 = vcvt.s32.f32 %v375
    %v440 = vcvt.s32.f32 %v376
    %v441 = vcvt.s32.f32 %v377
    %v442 = vcvt.s32.f32 %v378
    %v443 = vcvt.s32.f32 %v379
    %v444 = vcvt.s32.f32 %v380
    %v445 = vcvt.s32.f32 %v381
    %v446 = vcvt.s32.f32 %v382
    %v447 = vcvt.s32.f32 %v383
    %v448 = vcvt.s32.f32 %v384
    %v449 = vcvt.s32.f32 %v385
    %v450 = vcvt.s32.f32 %v386
    %v451 = vcvt.s32.f32 %v387
    %v452 = vcvt.s32.f32 %v388
    %v453 = vcvt.s32.f32 %v389
    %v454 = vcvt.s32.f32 %v390
    %v455 = vcvt.s32.f32 %v391
    %v456 = vcvt.s32.f32 %v392
    %v457 = vcvt.s32.f32 %v393
    %v458 = vcvt.s32.f32 %v394
    %v459 = vcvt.s32.f32 %v395
    %v460 = vcvt.s32.f32 %v396
    %v461 = vcvt.s32.f32 %v397
    %v462 = vcvt.s32.f32 %v398
    %v463 = vcvt.s32.f32 %v399
    %v528 = vrot.slane %v401, 7
    %vm529 = vcmask 1041409
    %v530 = vsel %vm529, %v528, %v400
    %v531 = vrot.slane %v402, 6
    %vm532 = vcmask 1042434
    %v533 = vsel %vm532, %v531, %v530
    %v534 = vrot.slane %v403, 5
    %vm535 = vcmask 1043459
    %v536 = vsel %vm535, %v534, %v533
    %v537 = vrot.slane %v404, 4
    %vm538 = vcmask 1044484
    %v539 = vsel %vm538, %v537, %v536
    %v540 = vrot.slane %v405, 3
    %vm541 = vcmask 1045509
    %v542 = vsel %vm541, %v540, %v539
    %v543 = vrot.slane %v406, 2
    %vm544 = vcmask 1046534
    %v545 = vsel %vm544, %v543, %v542
    %v546 = vrot.slane %v407, 1
    %vm547 = vcmask 1047559
    %v548 = vsel %vm547, %v546, %v545
    %v549 = vrot.slane %v409, 7
    %v550 = vsel %vm529, %v549, %v408
    %v551 = vrot.slane %v410, 6
    %v552 = vsel %vm532, %v551, %v550
    %v553 = vrot.slane %v411, 5
    %v554 = vsel %vm535, %v553, %v552
    %v555 = vrot.slane %v412, 4
    %v556 = vsel %vm538, %v555, %v554
    %v557 = vrot.slane %v413, 3
    %v558 = vsel %vm541, %v557, %v556
    %v559 = vrot.slane %v414, 2
    %v560 = vsel %vm544, %v559, %v558
    %v561 = vrot.slane %v415, 1
    %v562 = vsel %vm547, %v561, %v560
    %v563 = vrot.slane %v417, 7
    %v564 = vsel %vm529, %v563, %v416
    %v565 = vrot.slane %v418, 6
    %v566 = vsel %vm532, %v565, %v564
    %v567 = vrot.slane %v419, 5
    %v568 = vsel %vm535, %v567, %v566
    %v569 = vrot.slane %v420, 4
    %v570 = vsel %vm538, %v569, %v568
    %v571 = vrot.slane %v421, 3
    %v572 = vsel %vm541, %v571, %v570
    %v573 = vrot.slane %v422, 2
    %v574 = vsel %vm544, %v573, %v572
    %v575 = vrot.slane %v423, 1
    %v576 = vsel %vm547, %v575, %v574
    %v577 = vrot.slane %v425, 7
    %v578 = vsel %vm529, %v577, %v424
    %v579 = vrot.slane %v426, 6
    %v580 = vsel %vm532, %v579, %v578
    %v581 = vrot.slane %v427, 5
    %v582 = vsel %vm535, %v581, %v580
    %v583 = vrot.slane %v428, 4
    %v584 = vsel %vm538, %v583, %v582
    %v585 = vrot.slane %v429, 3
    %v586 = vsel %vm541, %v585, %v584
    %v587 = vrot.slane %v430, 2
    %v588 = vsel %vm544, %v587, %v586
    %v589 = vrot.slane %v431, 1
    %v590 = vsel %vm547, %v589, %v588
    %v591 = vrot.slane %v433, 7
    %v592 = vsel %vm529, %v591, %v432
    %v593 = vrot.slane %v434, 6
    %v594 = vsel %vm532, %v593, %v592
    %v595 = vrot.slane %v435, 5
    %v596 = vsel %vm535, %v595, %v594
    %v597 = vrot.slane %v436, 4
    %v598 = vsel %vm538, %v597, %v596
    %v599 = vrot.slane %v437, 3
    %v600 = vsel %vm541, %v599, %v598
    %v601 = vrot.slane %v438, 2
    %v602 = vsel %vm544, %v601, %v600
    %v603 = vrot.slane %v439, 1
    %v604 = vsel %vm547, %v603, %v602
    %v605 = vrot.slane %v441, 7
    %v606 = vsel %vm529, %v605, %v440
    %v607 = vrot.slane %v442, 6
    %v608 = vsel %vm532, %v607, %v606
    %v609 = vrot.slane %v443, 5
    %v610 = vsel %vm535, %v609, %v608
    %v611 = vrot.slane %v444, 4
    %v612 = vsel %vm538, %v611, %v610
    %v613 = vrot.slane %v445, 3
    %v614 = vsel %vm541, %v613, %v612
    %v615 = vrot.slane %v446, 2
    %v616 = vsel %vm544, %v615, %v614
    %v617 = vrot.slane %v447, 1
    %v618 = vsel %vm547, %v617, %v616
    %v619 = vrot.slane %v449, 7
    %v620 = vsel %vm529, %v619, %v448
    %v621 = vrot.slane %v450, 6
    %v622 = vsel %vm532, %v621, %v620
    %v623 = vrot.slane %v451, 5
    %v624 = vsel %vm535, %v623, %v622
    %v625 = vrot.slane %v452, 4
    %v626 = vsel %vm538, %v625, %v624
    %v627 = vrot.slane %v453, 3
    %v628 = vsel %vm541, %v627, %v626
    %v629 = vrot.slane %v454, 2
    %v630 = vsel %vm544, %v629, %v628
    %v631 = vrot.slane %v455, 1
    %v632 = vsel %vm547, %v631, %v630
    %v633 = vrot.slane %v457, 7
    %v634 = vsel %vm529, %v633, %v456
    %v635 = vrot.slane %v458, 6
    %v636 = vsel %vm532, %v635, %v634
    %v637 = vrot.slane %v459, 5
    %v638 = vsel %vm535, %v637, %v636
    %v639 = vrot.slane %v460, 4
    %v640 = vsel %vm538, %v639, %v638
    %v641 = vrot.slane %v461, 3
    %v642 = vsel %vm541, %v641, %v640
    %v643 = vrot.slane %v462, 2
    %v644 = vsel %vm544, %v643, %v642
    %v645 = vrot.slane %v463, 1
    %v646 = vsel %vm547, %v645, %v644
    %v655 = vsel %vm167, %v548, 0.0
    %v656 = vrot.slane %v655, 4
    %v657 = vadd.f32 %v655, %v656
    %v658 = vrot.slane %v657, 2
    %v659 = vadd.f32 %v657, %v658
    %v660 = vrot.slane %v659, 1
    %v661 = vadd.f32 %v659, %v660
    %v662 = vsel %vm167, %v562, 0.0
    %v663 = vrot.slane %v662, 4
    %v664 = vadd.f32 %v662, %v663
    %v665 = vrot.slane %v664, 2
    %v666 = vadd.f32 %v664, %v665
    %v667 = vrot.slane %v666, 1
    %v668 = vadd.f32 %v666, %v667
    %v669 = vsel %vm167, %v576, 0.0
    %v670 = vrot.slane %v669, 4
    %v671 = vadd.f32 %v669, %v670
    %v672 = vrot.slane %v671, 2
    %v673 = vadd.f32 %v671, %v672
    %v674 = vrot.slane %v673, 1
    %v675 = vadd.f32 %v673, %v674
    %v676 = vsel %vm167, %v590, 0.0
    %v677 = vrot.slane %v676, 4
    %v678 = vadd.f32 %v676, %v677
    %v679 = vrot.slane %v678, 2
    %v680 = vadd.f32 %v678, %v679
    %v681 = vrot.slane %v680, 1
    %v682 = vadd.f32 %v680, %v681
    %v683 = vsel %vm167, %v604, 0.0
    %v684 = vrot.slane %v683, 4
    %v685 = vadd.f32 %v683, %v684
    %v686 = vrot.slane %v685, 2
    %v687 = vadd.f32 %v685, %v686
    %v688 = vrot.slane %v687, 1
    %v689 = vadd.f32 %v687, %v688
    %v690 = vsel %vm167, %v618, 0.0
    %v691 = vrot.slane %v690, 4
    %v692 = vadd.f32 %v690, %v691
    %v693 = vrot.slane %v692, 2
    %v694 = vadd.f32 %v692, %v693
    %v695 = vrot.slane %v694, 1
    %v696 = vadd.f32 %v694, %v695
    %v697 = vsel %vm167, %v632, 0.0
    %v698 = vrot.slane %v697, 4
    %v699 = vadd.f32 %v697, %v698
    %v700 = vrot.slane %v699, 2
    %v701 = vadd.f32 %v699, %v700
    %v702 = vrot.slane %v701, 1
    %v703 = vadd.f32 %v701, %v702
    %v704 = vsel %vm167, %v646, 0.0
    %v705 = vrot.slane %v704, 4
    %v706 = vadd.f32 %v704, %v705
    %v707 = vrot.slane %v706, 2
    %v708 = vadd.f32 %v706, %v707
    %v709 = vrot.slane %v708, 1
    %v710 = vadd.f32 %v708, %v709
    %v711 = vsel %vm272, %v180, 0.0
    %v712 = vsel %vm273, %v193, 0.0
    %v713 = vsel %vm274, %v206, 0.0
    %v714 = vsel %vm275, %v219, 0.0
    %v715 = vsel %vm276, %v232, 0.0
    %v716 = vsel %vm277, %v245, 0.0
    %v717 = vsel %vm278, %v258, 0.0
    %v718 = vsel %vm279, %v271, 0.0
    %v719 = vsel %vm280, %v180, 0.0
    %v720 = vsel %vm281, %v193, 0.0
    %v721 = vsel %vm282, %v206, 0.0
    %v722 = vsel %vm283, %v219, 0.0
    %v723 = vsel %vm284, %v232, 0.0
    %v724 = vsel %vm285, %v245, 0.0
    %v725 = vsel %vm286, %v258, 0.0
    %v726 = vsel %vm287, %v271, 0.0
    %v727 = vsel %vm288, %v180, 0.0
    %v728 = vsel %vm289, %v193, 0.0
    %v729 = vsel %vm290, %v206, 0.0
    %v730 = vsel %vm291, %v219, 0.0
    %v731 = vsel %vm292, %v232, 0.0
    %v732 = vsel %vm293, %v245, 0.0
    %v733 = vsel %vm294, %v258, 0.0
    %v734 = vsel %vm295, %v271, 0.0
    %v735 = vsel %vm296, %v180, 0.0
    %v736 = vsel %vm297, %v193, 0.0
    %v737 = vsel %vm298, %v206, 0.0
    %v738 = vsel %vm299, %v219, 0.0
    %v739 = vsel %vm300, %v232, 0.0
    %v740 = vsel %vm301, %v245, 0.0
    %v741 = vsel %vm302, %v258, 0.0
    %v742 = vsel %vm303, %v271, 0.0
    %v743 = vsel %vm304, %v180, 0.0
    %v744 = vsel %vm305, %v193, 0.0
    %v745 = vsel %vm306, %v206, 0.0
    %v746 = vsel %vm307, %v219, 0.0
    %v747 = vsel %vm308, %v232, 0.0
    %v748 = vsel %vm309, %v245, 0.0
    %v749 = vsel %vm310, %v258, 0.0
    %v750 = vsel %vm311, %v271, 0.0
    %v751 = vsel %vm312, %v180, 0.0
    %v752 = vsel %vm313, %v193, 0.0
    %v753 = vsel %vm314, %v206, 0.0
    %v754 = vsel %vm315, %v219, 0.0
    %v755 = vsel %vm316, %v232, 0.0
    %v756 = vsel %vm317, %v245, 0.0
    %v757 = vsel %vm318, %v258, 0.0
    %v758 = vsel %vm319, %v271, 0.0
    %v759 = vsel %vm320, %v180, 0.0
    %v760 = vsel %vm321, %v193, 0.0
    %v761 = vsel %vm322, %v206, 0.0
    %v762 = vsel %vm323, %v219, 0.0
    %v763 = vsel %vm324, %v232, 0.0
    %v764 = vsel %vm325, %v245, 0.0
    %v765 = vsel %vm326, %v258, 0.0
    %v766 = vsel %vm327, %v271, 0.0
    %v767 = vsel %vm328, %v180, 0.0
    %v768 = vsel %vm329, %v193, 0.0
    %v769 = vsel %vm330, %v206, 0.0
    %v770 = vsel %vm331, %v219, 0.0
    %v771 = vsel %vm332, %v232, 0.0
    %v772 = vsel %vm333, %v245, 0.0
    %v773 = vsel %vm334, %v258, 0.0
    %v774 = vsel %vm335, %v271, 0.0
    %v839 = vrot.slane %v712, 7
    %v840 = vsel %vm529, %v839, %v711
    %v841 = vrot.slane %v713, 6
    %v842 = vsel %vm532, %v841, %v840
    %v843 = vrot.slane %v714, 5
    %v844 = vsel %vm535, %v843, %v842
    %v845 = vrot.slane %v715, 4
    %v846 = vsel %vm538, %v845, %v844
    %v847 = vrot.slane %v716, 3
    %v848 = vsel %vm541, %v847, %v846
    %v849 = vrot.slane %v717, 2
    %v850 = vsel %vm544, %v849, %v848
    %v851 = vrot.slane %v718, 1
    %v852 = vsel %vm547, %v851, %v850
    %v853 = vrot.slane %v720, 7
    %v854 = vsel %vm529, %v853, %v719
    %v855 = vrot.slane %v721, 6
    %v856 = vsel %vm532, %v855, %v854
    %v857 = vrot.slane %v722, 5
    %v858 = vsel %vm535, %v857, %v856
    %v859 = vrot.slane %v723, 4
    %v860 = vsel %vm538, %v859, %v858
    %v861 = vrot.slane %v724, 3
    %v862 = vsel %vm541, %v861, %v860
    %v863 = vrot.slane %v725, 2
    %v864 = vsel %vm544, %v863, %v862
    %v865 = vrot.slane %v726, 1
    %v866 = vsel %vm547, %v865, %v864
    %v867 = vrot.slane %v728, 7
    %v868 = vsel %vm529, %v867, %v727
    %v869 = vrot.slane %v729, 6
    %v870 = vsel %vm532, %v869, %v868
    %v871 = vrot.slane %v730, 5
    %v872 = vsel %vm535, %v871, %v870
    %v873 = vrot.slane %v731, 4
    %v874 = vsel %vm538, %v873, %v872
    %v875 = vrot.slane %v732, 3
    %v876 = vsel %vm541, %v875, %v874
    %v877 = vrot.slane %v733, 2
    %v878 = vsel %vm544, %v877, %v876
    %v879 = vrot.slane %v734, 1
    %v880 = vsel %vm547, %v879, %v878
    %v881 = vrot.slane %v736, 7
    %v882 = vsel %vm529, %v881, %v735
    %v883 = vrot.slane %v737, 6
    %v884 = vsel %vm532, %v883, %v882
    %v885 = vrot.slane %v738, 5
    %v886 = vsel %vm535, %v885, %v884
    %v887 = vrot.slane %v739, 4
    %v888 = vsel %vm538, %v887, %v886
    %v889 = vrot.slane %v740, 3
    %v890 = vsel %vm541, %v889, %v888
    %v891 = vrot.slane %v741, 2
    %v892 = vsel %vm544, %v891, %v890
    %v893 = vrot.slane %v742, 1
    %v894 = vsel %vm547, %v893, %v892
    %v895 = vrot.slane %v744, 7
    %v896 = vsel %vm529, %v895, %v743
    %v897 = vrot.slane %v745, 6
    %v898 = vsel %vm532, %v897, %v896
    %v899 = vrot.slane %v746, 5
    %v900 = vsel %vm535, %v899, %v898
    %v901 = vrot.slane %v747, 4
    %v902 = vsel %vm538, %v901, %v900
    %v903 = vrot.slane %v748, 3
    %v904 = vsel %vm541, %v903, %v902
    %v905 = vrot.slane %v749, 2
    %v906 = vsel %vm544, %v905, %v904
    %v907 = vrot.slane %v750, 1
    %v908 = vsel %vm547, %v907, %v906
    %v909 = vrot.slane %v752, 7
    %v910 = vsel %vm529, %v909, %v751
    %v911 = vrot.slane %v753, 6
    %v912 = vsel %vm532, %v911, %v910
    %v913 = vrot.slane %v754, 5
    %v914 = vsel %vm535, %v913, %v912
    %v915 = vrot.slane %v755, 4
    %v916 = vsel %vm538, %v915, %v914
    %v917 = vrot.slane %v756, 3
    %v918 = vsel %vm541, %v917, %v916
    %v919 = vrot.slane %v757, 2
    %v920 = vsel %vm544, %v919, %v918
    %v921 = vrot.slane %v758, 1
    %v922 = vsel %vm547, %v921, %v920
    %v923 = vrot.slane %v760, 7
    %v924 = vsel %vm529, %v923, %v759
    %v925 = vrot.slane %v761, 6
    %v926 = vsel %vm532, %v925, %v924
    %v927 = vrot.slane %v762, 5
    %v928 = vsel %vm535, %v927, %v926
    %v929 = vrot.slane %v763, 4
    %v930 = vsel %vm538, %v929, %v928
    %v931 = vrot.slane %v764, 3
    %v932 = vsel %vm541, %v931, %v930
    %v933 = vrot.slane %v765, 2
    %v934 = vsel %vm544, %v933, %v932
    %v935 = vrot.slane %v766, 1
    %v936 = vsel %vm547, %v935, %v934
    %v937 = vrot.slane %v768, 7
    %v938 = vsel %vm529, %v937, %v767
    %v939 = vrot.slane %v769, 6
    %v940 = vsel %vm532, %v939, %v938
    %v941 = vrot.slane %v770, 5
    %v942 = vsel %vm535, %v941, %v940
    %v943 = vrot.slane %v771, 4
    %v944 = vsel %vm538, %v943, %v942
    %v945 = vrot.slane %v772, 3
    %v946 = vsel %vm541, %v945, %v944
    %v947 = vrot.slane %v773, 2
    %v948 = vsel %vm544, %v947, %v946
    %v949 = vrot.slane %v774, 1
    %v950 = vsel %vm547, %v949, %v948
    %v959 = vsel %vm167, %v852, 0.0
    %v960 = vrot.slane %v959, 4
    %v961 = vadd.f32 %v959, %v960
    %v962 = vrot.slane %v961, 2
    %v963 = vadd.f32 %v961, %v962
    %v964 = vrot.slane %v963, 1
    %v965 = vadd.f32 %v963, %v964
    %v966 = vsel %vm167, %v866, 0.0
    %v967 = vrot.slane %v966, 4
    %v968 = vadd.f32 %v966, %v967
    %v969 = vrot.slane %v968, 2
    %v970 = vadd.f32 %v968, %v969
    %v971 = vrot.slane %v970, 1
    %v972 = vadd.f32 %v970, %v971
    %v973 = vsel %vm167, %v880, 0.0
    %v974 = vrot.slane %v973, 4
    %v975 = vadd.f32 %v973, %v974
    %v976 = vrot.slane %v975, 2
    %v977 = vadd.f32 %v975, %v976
    %v978 = vrot.slane %v977, 1
    %v979 = vadd.f32 %v977, %v978
    %v980 = vsel %vm167, %v894, 0.0
    %v981 = vrot.slane %v980, 4
    %v982 = vadd.f32 %v980, %v981
    %v983 = vrot.slane %v982, 2
    %v984 = vadd.f32 %v982, %v983
    %v985 = vrot.slane %v984, 1
    %v986 = vadd.f32 %v984, %v985
    %v987 = vsel %vm167, %v908, 0.0
    %v988 = vrot.slane %v987, 4
    %v989 = vadd.f32 %v987, %v988
    %v990 = vrot.slane %v989, 2
    %v991 = vadd.f32 %v989, %v990
    %v992 = vrot.slane %v991, 1
    %v993 = vadd.f32 %v991, %v992
    %v994 = vsel %vm167, %v922, 0.0
    %v995 = vrot.slane %v994, 4
    %v996 = vadd.f32 %v994, %v995
    %v997 = vrot.slane %v996, 2
    %v998 = vadd.f32 %v996, %v997
    %v999 = vrot.slane %v998, 1
    %v1000 = vadd.f32 %v998, %v999
    %v1001 = vsel %vm167, %v936, 0.0
    %v1002 = vrot.slane %v1001, 4
    %v1003 = vadd.f32 %v1001, %v1002
    %v1004 = vrot.slane %v1003, 2
    %v1005 = vadd.f32 %v1003, %v1004
    %v1006 = vrot.slane %v1005, 1
    %v1007 = vadd.f32 %v1005, %v1006
    %v1008 = vsel %vm167, %v950, 0.0
    %v1009 = vrot.slane %v1008, 4
    %v1010 = vadd.f32 %v1008, %v1009
    %v1011 = vrot.slane %v1010, 2
    %v1012 = vadd.f32 %v1010, %v1011
    %v1013 = vrot.slane %v1012, 1
    %v1014 = vadd.f32 %v1012, %v1013
    %v1015 = vmul.f32 %v661, %v180
    %v1016 = vmul.f32 %v668, %v193
    %v1017 = vmul.f32 %v675, %v206
    %v1018 = vmul.f32 %v682, %v219
    %v1019 = vmul.f32 %v689, %v232
    %v1020 = vmul.f32 %v696, %v245
    %v1021 = vmul.f32 %v703, %v258
    %v1022 = vmul.f32 %v710, %v271
    %v1023 = vadd.f32 %v1015, 1.0
    %v1024 = vadd.f32 %v1016, 1.0
    %v1025 = vadd.f32 %v1017, 1.0
    %v1026 = vadd.f32 %v1018, 1.0
    %v1027 = vadd.f32 %v1019, 1.0
    %v1028 = vadd.f32 %v1020, 1.0
    %v1029 = vadd.f32 %v1021, 1.0
    %v1030 = vadd.f32 %v1022, 1.0
    %vm1031 = vcmp.gt.f32.partialorder %v1023, %v965
    %vm1032 = vcmp.gt.f32.partialorder %v1024, %v972
    %vm1033 = vcmp.gt.f32.partialorder %v1025, %v979
    %vm1034 = vcmp.gt.f32.partialorder %v1026, %v986
    %vm1035 = vcmp.gt.f32.partialorder %v1027, %v993
    %vm1036 = vcmp.gt.f32.partialorder %v1028, %v1000
    %vm1037 = vcmp.gt.f32.partialorder %v1029, %v1007
    %vm1038 = vcmp.gt.f32.partialorder %v1030, %v1014
    %v1039 = vsel %vm1031, 1, 0
    %v1040 = vsel %vm1032, 1, 0
    %v1041 = vsel %vm1033, 1, 0
    %v1042 = vsel %vm1034, 1, 0
    %v1043 = vsel %vm1035, 1, 0
    %v1044 = vsel %vm1036, 1, 0
    %v1045 = vsel %vm1037, 1, 0
    %v1046 = vsel %vm1038, 1, 0
    %v1047 = vcvt.s32.f32 %v1039
    %v1048 = vcvt.s32.f32 %v1040
    %v1049 = vcvt.s32.f32 %v1041
    %v1050 = vcvt.s32.f32 %v1042
    %v1051 = vcvt.s32.f32 %v1043
    %v1052 = vcvt.s32.f32 %v1044
    %v1053 = vcvt.s32.f32 %v1045
    %v1054 = vcvt.s32.f32 %v1046
    %v1063 = vrot.slane %v1048, 7
    %v1064 = vsel %vm529, %v1063, %v1047
    %v1065 = vrot.slane %v1049, 6
    %v1066 = vsel %vm532, %v1065, %v1064
    %v1067 = vrot.slane %v1050, 5
    %v1068 = vsel %vm535, %v1067, %v1066
    %v1069 = vrot.slane %v1051, 4
    %v1070 = vsel %vm538, %v1069, %v1068
    %v1071 = vrot.slane %v1052, 3
    %v1072 = vsel %vm541, %v1071, %v1070
    %v1073 = vrot.slane %v1053, 2
    %v1074 = vsel %vm544, %v1073, %v1072
    %v1075 = vrot.slane %v1054, 1
    %v1076 = vsel %vm547, %v1075, %v1074
    %v1078 = vsel %vm167, %v1076, 0.0
    %v1079 = vrot.slane %v1078, 4
    %v1080 = vadd.f32 %v1078, %v1079
    %v1081 = vrot.slane %v1080, 2
    %v1082 = vadd.f32 %v1080, %v1081
    %v1083 = vrot.slane %v1082, 1
    %v1084 = vadd.f32 %v1082, %v1083
    %v1085 = vsel %vm1031, %v180, 0.0
    %v1086 = vsel %vm1032, %v193, 0.0
    %v1087 = vsel %vm1033, %v206, 0.0
    %v1088 = vsel %vm1034, %v219, 0.0
    %v1089 = vsel %vm1035, %v232, 0.0
    %v1090 = vsel %vm1036, %v245, 0.0
    %v1091 = vsel %vm1037, %v258, 0.0
    %v1092 = vsel %vm1038, %v271, 0.0
    %v1101 = vrot.slane %v1086, 7
    %v1102 = vsel %vm529, %v1101, %v1085
    %v1103 = vrot.slane %v1087, 6
    %v1104 = vsel %vm532, %v1103, %v1102
    %v1105 = vrot.slane %v1088, 5
    %v1106 = vsel %vm535, %v1105, %v1104
    %v1107 = vrot.slane %v1089, 4
    %v1108 = vsel %vm538, %v1107, %v1106
    %v1109 = vrot.slane %v1090, 3
    %v1110 = vsel %vm541, %v1109, %v1108
    %v1111 = vrot.slane %v1091, 2
    %v1112 = vsel %vm544, %v1111, %v1110
    %v1113 = vrot.slane %v1092, 1
    %v1114 = vsel %vm547, %v1113, %v1112
    %v1116 = vsel %vm167, %v1114, 0.0
    %v1117 = vrot.slane %v1116, 4
    %v1118 = vadd.f32 %v1116, %v1117
    %v1119 = vrot.slane %v1118, 2
    %v1120 = vadd.f32 %v1118, %v1119
    %v1121 = vrot.slane %v1120, 1
    %v1122 = vadd.f32 %v1120, %v1121
    %v1123 = vsub.f32 %v1122, 1.0
    %v1124 = vrcp.pop %v1084
    %v1125 = vmul.f32 %v1123, %v1124
    %v1126 = vlaneseq
    %v1127 = vshrl.u32 %v1126, 7
    %v1128 = vsub.s32 0, %v1127
    %v1129 = vrot.slane %v1125, %v1128
    %v1130 = vsub.f32 %v180, %v1129
    %v1131 = vsub.f32 %v193, %v1129
    %v1132 = vsub.f32 %v206, %v1129
    %v1133 = vsub.f32 %v219, %v1129
    %v1134 = vsub.f32 %v232, %v1129
    %v1135 = vsub.f32 %v245, %v1129
    %v1136 = vsub.f32 %v258, %v1129
    %v1137 = vsub.f32 %v271, %v1129
    %v1138 = vmax.f32 %v1130, 0.0
    %v1139 = vmax.f32 %v1131, 0.0
    %v1140 = vmax.f32 %v1132, 0.0
    %v1141 = vmax.f32 %v1133, 0.0
    %v1142 = vmax.f32 %v1134, 0.0
    %v1143 = vmax.f32 %v1135, 0.0
    %v1144 = vmax.f32 %v1136, 0.0
    %v1145 = vmax.f32 %v1137, 0.0
    %v1154 = vrot.slane %v1139, 7
    %v1155 = vsel %vm529, %v1154, %v1138
    %v1156 = vrot.slane %v1140, 6
    %v1157 = vsel %vm532, %v1156, %v1155
    %v1158 = vrot.slane %v1141, 5
    %v1159 = vsel %vm535, %v1158, %v1157
    %v1160 = vrot.slane %v1142, 4
    %v1161 = vsel %vm538, %v1160, %v1159
    %v1162 = vrot.slane %v1143, 3
    %v1163 = vsel %vm541, %v1162, %v1161
    %v1164 = vrot.slane %v1144, 2
    %v1165 = vsel %vm544, %v1164, %v1163
    %v1166 = vrot.slane %v1145, 1
    %v1167 = vsel %vm547, %v1166, %v1165
    %1169 = vst.msk [vmem:[#allocation7] sm:$0xff] %vm167, %v1167
    // Predicated region
    $region18: #{tpu_custom_call.1} parent=1 // pred_check
      _
    $region19: #{tpu_custom_call.1} parent=1 // pred_check_branch
      %1171 = sbr.rel (0) target = $region21
    $region20: #{tpu_custom_call.1} parent=1 // pred_region
      %s1173 = ssub.s32 128, 128
      %1174 = vsyncadd [#allocation4], %s1173
      %s1176 = sshll.u32 [#allocation7], 4
      %s1177 = int_to_ptr.vmem [resolvable:$true] %s1176
      %1179 = dma.vmem_to_hbm [thread:$0]  %s1177, 128, %s2, [#allocation4]
    $region21: #{tpu_custom_call.1} parent=1 // pred_fallthru
      _
    // Predicated region
    $region22: #{tpu_custom_call.1} parent=1 // pred_check
      _
    $region23: #{tpu_custom_call.1} parent=1 // pred_check_branch
      %1181 = sbr.rel (0) target = $region25
    $region24: #{tpu_custom_call.1} parent=1 // pred_region
      %1182 = dma.done [#allocation4], 128
    $region25: #{tpu_custom_call.1} parent=1 // pred_fallthru
      _
    %1183 = vsyncpa [#allocation3], 1
    %1184 = vsyncpa [#allocation6], 1
    %1185 = vsyncpa [#allocation4], 1

</llo_original>
